<compile_context>
chip_gen: v5e
topology: v5e:2x2
jax: 0.10.0
libtpu: 0.0.40
codegen_flags: <defaults>
</compile_context>

<pallas_src>
import functools

import jax
import jax.numpy as jnp
from jax import lax
from jax.experimental import pallas as pl
from jax.experimental.pallas import tpu as pltpu


def _round_up(x, m):
    return (x + m - 1) // m * m


def _vmem_capacity_bytes():
    try:
        return int(pltpu.get_tpu_info().vmem_capacity_bytes)
    except Exception:
        return 64 * 1024 * 1024      # conservative fallback (v7x per-TC VMEM)


def _fused_bytes(Bp, Dp, H1p, OUTp):
    bf, f = 2, 4
    blocks = (Bp * Dp * bf + Dp * H1p * bf + H1p * OUTp * bf   # x, w1, w2
              + Bp * OUTp * f                                  # out
              + 8 * H1p * f + 2 * OUTp * f)                    # small vectors
    live = 3 * Bp * H1p * f                                    # f32 h temps
    return 2 * blocks + live                                   # 2x: pipeline bufs


def _stage_bytes(TB, Dp, H1p, OUTp):
    bf, f = 2, 4
    s1 = (2 * TB * Dp * bf + 2 * Dp * H1p * bf        # x tile, w1 (dbl-buffered)
          + 2 * TB * H1p * bf + 4 * 8 * H1p * f       # h-out tile, psum/pssq
          + 3 * TB * H1p * f)                         # live f32 temporaries
    s2 = (2 * TB * H1p * bf + 2 * H1p * OUTp * bf     # h tile, w2
          + 2 * TB * OUTp * f + 3 * TB * H1p * f      # out tile, live temps
          + 8 * H1p * f + 2 * OUTp * f)
    return max(s1, s2)


def _vmem_limit_bytes(needed, cap):
    return int(min(max(2 * needed, 32 << 20), max(cap - (4 << 20), 32 << 20)))


# ---------------------------------------------------------------------------
# Fused fast path: Linear1 -> BN(batch stats) -> LeakyReLU -> Linear2, one call.
# ---------------------------------------------------------------------------
def _fused_kernel(inv_b_ref, x_ref, w1_ref, gamma_ref, beta_ref, w2_ref,
                  b2_ref, o_ref, *, eps, n_pad):
    # Linear-1 (bf16 x bf16 -> f32 on the MXU).  No b1: exactly cancelled by
    # the BN mean subtraction; keeps zero-padded batch rows exactly zero.
    h = jnp.dot(x_ref[...], w1_ref[...], preferred_element_type=jnp.float32)
    inv_b = inv_b_ref[0]                                  # SMEM scalar (1/B)

    # Moments: grouped (.., 8, H1p) VPU adds, single sublane reduce at the end.
    hg = h.reshape(-1, 8, h.shape[-1])
    mean = jnp.sum(jnp.sum(hg, axis=0), axis=0, keepdims=True) * inv_b

    # Centered (shift-robust) variance.  Each zero-padded batch row would add
    # (0 - mean)^2 = mean^2; remove that exactly with the n_pad correction.
    c = h - mean
    cg = c.reshape(-1, 8, c.shape[-1])
    ssq = jnp.sum(jnp.sum(cg * cg, axis=0), axis=0, keepdims=True)
    var = jnp.maximum((ssq - n_pad * mean * mean) * inv_b, 0.0)

    scale = gamma_ref[...] * lax.rsqrt(var + eps)         # fold gamma in
    hn = c * scale + beta_ref[...]                        # == (h-mean)*scale+beta
    hn = jnp.where(hn >= 0, hn, 0.01 * hn)                # LeakyReLU(0.01)
    out = jnp.dot(hn.astype(jnp.bfloat16), w2_ref[...],
                  preferred_element_type=jnp.float32)
    o_ref[...] = (out + b2_ref[...]).astype(o_ref.dtype)  # lane-dense store


# ---------------------------------------------------------------------------
# Two-pass path (large batch).  Pass 1: h = x@w1 (cached, bf16) + per-tile
# partial moments.  Pass 2: BN affine -> LeakyReLU -> Linear2 on the cached h.
# Both passes have only per-tile outputs -> fully "parallel" grids.
# ---------------------------------------------------------------------------
def _stage1_kernel(x_ref, w1_ref, h_ref, psum_ref, pssq_ref):
    h = jnp.dot(x_ref[...], w1_ref[...], preferred_element_type=jnp.float32)
    h_ref[...] = h.astype(h_ref.dtype)            # cache h for pass 2 (bf16)
    # (8, H1p) partial moments: VPU-only adds here; the 8->1 sublane reduce
    # and the cross-tile combine happen once in the tiny wrapper step.
    hg = h.reshape(-1, 8, h.shape[-1])
    psum_ref[...] = jnp.sum(hg, axis=0)
    pssq_ref[...] = jnp.sum(hg * hg, axis=0)


def _stage2_kernel(h_ref, scale_ref, shift_ref, w2_ref, b2_ref, o_ref):
    h = h_ref[...].astype(jnp.float32) * scale_ref[...] + shift_ref[...]
    h = jnp.where(h >= 0, h, 0.01 * h)            # LeakyReLU(0.01)
    out = jnp.dot(h.astype(jnp.bfloat16), w2_ref[...],
                  preferred_element_type=jnp.float32)
    o_ref[...] = (out + b2_ref[...]).astype(o_ref.dtype)


# ---------------------------------------------------------------------------
# Wrapper: padding, dispatch (fused vs. two-pass), tiling.
# ---------------------------------------------------------------------------
def network_forward(x, params, *, eps=1e-5, out_dtype=jnp.float32,
                    tb_cap=None, force_two_pass=False):
    """x: (B, input_dim) float32.  params: dict from init_params."""
    w1, gamma, beta, w2, b2 = (params["w1"], params["gamma"], params["beta"],
                               params["w2"], params["b2"])
    # params["b1"] intentionally unused: cancelled exactly by training-mode BN.
    B, D = x.shape
    H1 = w1.shape[1]
    OUT = w2.shape[1]
    f32 = jnp.float32

    # Lane-dense (multiple-of-128) feature padding; zero padding is exact.
    Dp = _round_up(D, 128)
    H1p = _round_up(H1, 128)
    OUTp = _round_up(OUT, 128)

    vmem_cap = _vmem_capacity_bytes()
    if tb_cap is None:
        tb_cap = 1024 if vmem_cap >= 100 * 1024 * 1024 else 512

    w1_p = jnp.pad(w1, ((0, Dp - D), (0, H1p - H1))).astype(jnp.bfloat16)
    g_p = jnp.pad(gamma.astype(f32), ((0, 0), (0, H1p - H1)))
    bt_p = jnp.pad(beta.astype(f32), ((0, 0), (0, H1p - H1)))
    w2_p = jnp.pad(w2, ((0, H1p - H1), (0, OUTp - OUT))).astype(jnp.bfloat16)
    b2_p = jnp.pad(b2.astype(f32), ((0, 0), (0, OUTp - OUT)))
    # TODO(synk): fuse the pad+bf16-cast of x into the pallas_call inputs
    # (allow_input_fusion) to drop one extra HBM round trip over x.

    # ---------------- fused single-call fast path ----------------
    Bp_f = _round_up(B, 8)
    if (not force_two_pass) and _fused_bytes(Bp_f, Dp, H1p, OUTp) <= 0.4 * vmem_cap:
        Bp = Bp_f
        x_p = jnp.pad(x, ((0, Bp - B), (0, Dp - D))).astype(jnp.bfloat16)
        inv_b = jnp.full((1,), 1.0 / B, f32)     # SMEM scalar, not baked
        vmem_limit = _vmem_limit_bytes(_fused_bytes(Bp, Dp, H1p, OUTp), vmem_cap)

        out_p = pl.pallas_call(
            functools.partial(_fused_kernel, eps=eps, n_pad=Bp - B),
            out_shape=jax.ShapeDtypeStruct((Bp, OUTp), out_dtype),
            grid=(1,),
            in_specs=[
                pl.BlockSpec(memory_space=pltpu.MemorySpace.SMEM),  # 1/B
                pl.BlockSpec((Bp, Dp), lambda i: (0, 0)),           # x
                pl.BlockSpec((Dp, H1p), lambda i: (0, 0)),          # w1
                pl.BlockSpec((1, H1p), lambda i: (0, 0)),           # gamma
                pl.BlockSpec((1, H1p), lambda i: (0, 0)),           # beta
                pl.BlockSpec((H1p, OUTp), lambda i: (0, 0)),        # w2
                pl.BlockSpec((1, OUTp), lambda i: (0, 0)),          # b2
            ],
            out_specs=pl.BlockSpec((Bp, OUTp), lambda i: (0, 0)),
            compiler_params=pltpu.CompilerParams(
                dimension_semantics=("arbitrary",),
                vmem_limit_bytes=vmem_limit),
        )(inv_b, x_p, w1_p, g_p, bt_p, w2_p, b2_p)
        return out_p[:B, :OUT]

    # ---------------- two-pass path (large batch) ----------------
    TB = min(tb_cap, _round_up(B, 8))
    while TB > 8 and _stage_bytes(TB, Dp, H1p, OUTp) > 0.45 * vmem_cap:
        TB = max(8, _round_up(TB // 2, 8))
    Bp = _round_up(B, TB)
    nb = Bp // TB
    x_p = jnp.pad(x, ((0, Bp - B), (0, Dp - D))).astype(jnp.bfloat16)
    vmem_limit = _vmem_limit_bytes(_stage_bytes(TB, Dp, H1p, OUTp), vmem_cap)

    # Pass 1: cache h and emit per-tile partial moments (fully parallel grid).
    h_c, psum, pssq = pl.pallas_call(
        _stage1_kernel,
        out_shape=(jax.ShapeDtypeStruct((Bp, H1p), jnp.bfloat16),
                   jax.ShapeDtypeStruct((nb * 8, H1p), f32),
                   jax.ShapeDtypeStruct((nb * 8, H1p), f32)),
        grid=(nb,),
        in_specs=[
            pl.BlockSpec((TB, Dp), lambda i: (i, 0)),       # x tile
            pl.BlockSpec((Dp, H1p), lambda i: (0, 0)),      # w1 (resident)
        ],
        out_specs=(pl.BlockSpec((TB, H1p), lambda i: (i, 0)),
                   pl.BlockSpec((8, H1p), lambda i: (i, 0)),
                   pl.BlockSpec((8, H1p), lambda i: (i, 0))),
        compiler_params=pltpu.CompilerParams(
            dimension_semantics=("parallel",),
            vmem_limit_bytes=vmem_limit),
    )(x_p, w1_p)

    # Tiny cross-tile combine (XLA): fold BN into a single scale/shift.
    # Zero-padded batch rows contributed 0 to both moments, so dividing by the
    # true B keeps the statistics exact.
    s = jnp.sum(psum, axis=0, keepdims=True)
    q = jnp.sum(pssq, axis=0, keepdims=True)
    mean = s / B
    var = jnp.maximum(q / B - mean * mean, 0.0)
    scale = g_p * lax.rsqrt(var + eps)
    shift = bt_p - mean * scale

    # Pass 2: BN affine -> LeakyReLU -> Linear2 on the cached h (parallel grid).
    out_p = pl.pallas_call(
        _stage2_kernel,
        out_shape=jax.ShapeDtypeStruct((Bp, OUTp), out_dtype),
        grid=(nb,),
        in_specs=[
            pl.BlockSpec((TB, H1p), lambda i: (i, 0)),      # cached h tile
            pl.BlockSpec((1, H1p), lambda i: (0, 0)),       # scale
            pl.BlockSpec((1, H1p), lambda i: (0, 0)),       # shift
            pl.BlockSpec((H1p, OUTp), lambda i: (0, 0)),    # w2
            pl.BlockSpec((1, OUTp), lambda i: (0, 0)),      # b2
        ],
        out_specs=pl.BlockSpec((TB, OUTp), lambda i: (i, 0)),
        compiler_params=pltpu.CompilerParams(
            dimension_semantics=("parallel",),
            vmem_limit_bytes=vmem_limit),
    )(h_c, scale, shift, w2_p, b2_p)

    return out_p[:B, :OUT]


# ---------------------------------------------------------------------------
# Parameter init (PyTorch-style) and pure-JAX f32 reference.
# ---------------------------------------------------------------------------
def init_params(key, input_dim, hidden1_dim, output_dim):
    k1, k2, k3, k4 = jax.random.split(key, 4)
    bound1 = 1.0 / jnp.sqrt(input_dim)
    bound2 = 1.0 / jnp.sqrt(hidden1_dim)
    # Weights stored pre-transposed: (in_features, out_features)
    w1 = jax.random.uniform(k1, (input_dim, hidden1_dim), jnp.float32,
                            -bound1, bound1)
    b1 = jax.random.uniform(k2, (1, hidden1_dim), jnp.float32, -bound1, bound1)
    gamma = jnp.ones((1, hidden1_dim), jnp.float32)    # BatchNorm1d weight
    beta = jnp.zeros((1, hidden1_dim), jnp.float32)    # BatchNorm1d bias
    w2 = jax.random.uniform(k3, (hidden1_dim, output_dim), jnp.float32,
                            -bound2, bound2)
    b2 = jax.random.uniform(k4, (1, output_dim), jnp.float32, -bound2, bound2)
    return dict(w1=w1, b1=b1, gamma=gamma, beta=beta, w2=w2, b2=b2)


def _reference(x, p):
    """Faithful f32 reference (keeps +b1; BN cancels it mathematically)."""
    h = x @ p["w1"] + p["b1"]
    mean = jnp.mean(h, axis=0, keepdims=True)
    var = jnp.mean((h - mean) ** 2, axis=0, keepdims=True)
    h = (h - mean) / jnp.sqrt(var + 1e-5) * p["gamma"] + p["beta"]
    h = jnp.where(h >= 0, h, 0.01 * h)
    return h @ p["w2"] + p["b2"]


if __name__ == "__main__":
    B, input_dim, hidden1_dim, output_dim = 8, 16, 32, 8

    key = jax.random.PRNGKey(0)
    kx, kp, kx2 = jax.random.split(key, 3)
    params = init_params(kp, input_dim, hidden1_dim, output_dim)

    # Path 1: fused single-kernel fast path (small batch).
    x = jax.random.normal(kx, (B, input_dim), jnp.float32)
    out = jax.block_until_ready(network_forward(x, params))
    ref = _reference(x, params)
    assert out.shape == (B, output_dim)
    # bf16 MXU inputs -> looser tolerance (BN statistics math stays f32).
    assert jnp.allclose(out, ref, atol=4e-2, rtol=4e-2), "fused path mismatch"

    # Path 2: forced two-pass tiled path (exercises batch tiling + padding:
    # B=300 with TB=128 -> 3 tiles, 84 zero-padded rows).
    B2 = 300
    x2 = jax.random.normal(kx2, (B2, input_dim), jnp.float32)
    out2 = jax.block_until_ready(
        network_forward(x2, params, force_two_pass=True, tb_cap=128))
    ref2 = _reference(x2, params)
    assert out2.shape == (B2, output_dim)
    assert jnp.allclose(out2, ref2, atol=4e-2, rtol=4e-2), "two-pass mismatch"

    print("KERNEL_OK")
</pallas_src>

<mosaic_0001>
module attributes {stable_mosaic.version = 11 : i64} {
  func.func @_fused_kernel(%arg0: i32, %arg1: memref<1xf32, #tpu.memory_space<smem>>, %arg2: memref<8x128xbf16, #tpu.memory_space<vmem>>, %arg3: memref<128x128xbf16, #tpu.memory_space<vmem>>, %arg4: memref<1x128xf32, #tpu.memory_space<vmem>>, %arg5: memref<1x128xf32, #tpu.memory_space<vmem>>, %arg6: memref<128x128xbf16, #tpu.memory_space<vmem>>, %arg7: memref<1x128xf32, #tpu.memory_space<vmem>>, %arg8: memref<8x128xf32, #tpu.memory_space<vmem>>) attributes {dimension_semantics = [#tpu.dimension_semantics<arbitrary>], iteration_bounds = array<i64: 1>, scalar_prefetch = 0 : i64, scratch_operands = 0 : i64, tpu.core_type = #tpu.core_type<tc>, window_params = [{transform_indices = @transform_0, window_bounds = array<i64: 1>}, {pipeline_mode = #tpu.pipeline_mode<synchronous>, transform_indices = @transform_1, window_bounds = array<i64: 8, 128>}, {pipeline_mode = #tpu.pipeline_mode<synchronous>, transform_indices = @transform_2, window_bounds = array<i64: 128, 128>}, {pipeline_mode = #tpu.pipeline_mode<synchronous>, transform_indices = @transform_3, window_bounds = array<i64: 1, 128>}, {pipeline_mode = #tpu.pipeline_mode<synchronous>, transform_indices = @transform_4, window_bounds = array<i64: 1, 128>}, {pipeline_mode = #tpu.pipeline_mode<synchronous>, transform_indices = @transform_5, window_bounds = array<i64: 128, 128>}, {pipeline_mode = #tpu.pipeline_mode<synchronous>, transform_indices = @transform_6, window_bounds = array<i64: 1, 128>}, {pipeline_mode = #tpu.pipeline_mode<synchronous>, transform_indices = @transform_7, window_bounds = array<i64: 8, 128>}]} {
    %c0 = arith.constant 0 : index
    %c0_0 = arith.constant 0 : index
    %0 = vector.load %arg2[%c0, %c0_0] : memref<8x128xbf16, #tpu.memory_space<vmem>>, vector<8x128xbf16>
    %c0_1 = arith.constant 0 : index
    %c0_2 = arith.constant 0 : index
    %1 = vector.load %arg3[%c0_1, %c0_2] : memref<128x128xbf16, #tpu.memory_space<vmem>>, vector<128x128xbf16>
    %cst = arith.constant dense<0.000000e+00> : vector<8x128xf32>
    %2 = tpu.matmul %0, %1, %cst {dimension_numbers = #tpu.dot_dimension_numbers<[1], [0], [0], [1], [0, 0, 1, 1], [], []>} : vector<8x128xbf16>, vector<128x128xbf16>, vector<8x128xf32> -> vector<8x128xf32>
    %c0_3 = arith.constant 0 : index
    %3 = memref.load %arg1[%c0_3] : memref<1xf32, #tpu.memory_space<smem>>
    %4 = vector.shape_cast %2 : vector<8x128xf32> to vector<1x8x128xf32>
    %cst_4 = arith.constant dense<0.000000e+00> : vector<8x128xf32>
    %5 = vector.multi_reduction <add>, %4, %cst_4 [0] : vector<1x8x128xf32> to vector<8x128xf32>
    %cst_5 = arith.constant dense<0.000000e+00> : vector<128xf32>
    %6 = vector.multi_reduction <add>, %5, %cst_5 [0] : vector<8x128xf32> to vector<128xf32>
    %7 = vector.shape_cast %6 : vector<128xf32> to vector<1x128xf32>
    %8 = vector.broadcast %3 : f32 to vector<1x128xf32>
    %9 = arith.mulf %7, %8 : vector<1x128xf32>
    %10 = vector.broadcast %9 : vector<1x128xf32> to vector<8x128xf32>
    %11 = arith.subf %2, %10 : vector<8x128xf32>
    %12 = vector.shape_cast %11 : vector<8x128xf32> to vector<1x8x128xf32>
    %13 = arith.mulf %12, %12 : vector<1x8x128xf32>
    %cst_6 = arith.constant dense<0.000000e+00> : vector<8x128xf32>
    %14 = vector.multi_reduction <add>, %13, %cst_6 [0] : vector<1x8x128xf32> to vector<8x128xf32>
    %cst_7 = arith.constant dense<0.000000e+00> : vector<128xf32>
    %15 = vector.multi_reduction <add>, %14, %cst_7 [0] : vector<8x128xf32> to vector<128xf32>
    %16 = vector.shape_cast %15 : vector<128xf32> to vector<1x128xf32>
    %cst_8 = arith.constant 0.000000e+00 : f32
    %17 = vector.broadcast %cst_8 : f32 to vector<1x128xf32>
    %18 = arith.mulf %17, %9 : vector<1x128xf32>
    %19 = arith.mulf %18, %9 : vector<1x128xf32>
    %20 = arith.subf %16, %19 : vector<1x128xf32>
    %21 = vector.broadcast %3 : f32 to vector<1x128xf32>
    %22 = arith.mulf %20, %21 : vector<1x128xf32>
    %cst_9 = arith.constant 0.000000e+00 : f32
    %23 = vector.broadcast %cst_9 : f32 to vector<1x128xf32>
    %24 = arith.maximumf %22, %23 : vector<1x128xf32>
    %c0_10 = arith.constant 0 : index
    %c0_11 = arith.constant 0 : index
    %25 = vector.load %arg4[%c0_10, %c0_11] : memref<1x128xf32, #tpu.memory_space<vmem>>, vector<1x128xf32>
    %cst_12 = arith.constant 9.99999974E-6 : f32
    %26 = vector.broadcast %cst_12 : f32 to vector<1x128xf32>
    %27 = arith.addf %24, %26 : vector<1x128xf32>
    %28 = math.rsqrt %27 : vector<1x128xf32>
    %29 = arith.mulf %25, %28 : vector<1x128xf32>
    %30 = vector.broadcast %29 : vector<1x128xf32> to vector<8x128xf32>
    %31 = arith.mulf %11, %30 : vector<8x128xf32>
    %c0_13 = arith.constant 0 : index
    %c0_14 = arith.constant 0 : index
    %32 = vector.load %arg5[%c0_13, %c0_14] : memref<1x128xf32, #tpu.memory_space<vmem>>, vector<1x128xf32>
    %33 = vector.broadcast %32 : vector<1x128xf32> to vector<8x128xf32>
    %34 = arith.addf %31, %33 : vector<8x128xf32>
    %cst_15 = arith.constant 0.000000e+00 : f32
    %35 = vector.broadcast %cst_15 : f32 to vector<8x128xf32>
    %36 = arith.cmpf oge, %34, %35 : vector<8x128xf32>
    %cst_16 = arith.constant 0.00999999977 : f32
    %37 = vector.broadcast %cst_16 : f32 to vector<8x128xf32>
    %38 = arith.mulf %37, %34 : vector<8x128xf32>
    %39 = arith.select %36, %34, %38 : vector<8x128xi1>, vector<8x128xf32>
    %40 = arith.truncf %39 : vector<8x128xf32> to vector<8x128xbf16>
    %c0_17 = arith.constant 0 : index
    %c0_18 = arith.constant 0 : index
    %41 = vector.load %arg6[%c0_17, %c0_18] : memref<128x128xbf16, #tpu.memory_space<vmem>>, vector<128x128xbf16>
    %cst_19 = arith.constant dense<0.000000e+00> : vector<8x128xf32>
    %42 = tpu.matmul %40, %41, %cst_19 {dimension_numbers = #tpu.dot_dimension_numbers<[1], [0], [0], [1], [0, 0, 1, 1], [], []>} : vector<8x128xbf16>, vector<128x128xbf16>, vector<8x128xf32> -> vector<8x128xf32>
    %c0_20 = arith.constant 0 : index
    %c0_21 = arith.constant 0 : index
    %43 = vector.load %arg7[%c0_20, %c0_21] : memref<1x128xf32, #tpu.memory_space<vmem>>, vector<1x128xf32>
    %44 = vector.broadcast %43 : vector<1x128xf32> to vector<8x128xf32>
    %45 = arith.addf %42, %44 : vector<8x128xf32>
    %c0_22 = arith.constant 0 : index
    %c0_23 = arith.constant 0 : index
    %46 = vector.load %arg8[%c0_22, %c0_23] : memref<8x128xf32, #tpu.memory_space<vmem>>, vector<8x128xf32>
    tpu.vector_store %arg8[%c0_22, %c0_23], %45 {strides = array<i32>} : memref<8x128xf32, #tpu.memory_space<vmem>>, vector<8x128xf32>,
    return
  }
  func.func @transform_0(%arg0: i32) -> i32 {
    %c0_i32 = arith.constant 0 : i32
    %c0_i32_0 = arith.constant 0 : i32
    return %c0_i32 : i32
  }
  func.func @transform_1(%arg0: i32) -> (i32, i32) {
    %c0_i32 = arith.constant 0 : i32
    %c0_i32_0 = arith.constant 0 : i32
    %c0_i32_1 = arith.constant 0 : i32
    return %c0_i32, %c0_i32_0 : i32, i32
  }
  func.func @transform_2(%arg0: i32) -> (i32, i32) {
    %c0_i32 = arith.constant 0 : i32
    %c0_i32_0 = arith.constant 0 : i32
    %c0_i32_1 = arith.constant 0 : i32
    return %c0_i32, %c0_i32_0 : i32, i32
  }
  func.func @transform_3(%arg0: i32) -> (i32, i32) {
    %c0_i32 = arith.constant 0 : i32
    %c0_i32_0 = arith.constant 0 : i32
    %c0_i32_1 = arith.constant 0 : i32
    return %c0_i32, %c0_i32_0 : i32, i32
  }
  func.func @transform_4(%arg0: i32) -> (i32, i32) {
    %c0_i32 = arith.constant 0 : i32
    %c0_i32_0 = arith.constant 0 : i32
    %c0_i32_1 = arith.constant 0 : i32
    return %c0_i32, %c0_i32_0 : i32, i32
  }
  func.func @transform_5(%arg0: i32) -> (i32, i32) {
    %c0_i32 = arith.constant 0 : i32
    %c0_i32_0 = arith.constant 0 : i32
    %c0_i32_1 = arith.constant 0 : i32
    return %c0_i32, %c0_i32_0 : i32, i32
  }
  func.func @transform_6(%arg0: i32) -> (i32, i32) {
    %c0_i32 = arith.constant 0 : i32
    %c0_i32_0 = arith.constant 0 : i32
    %c0_i32_1 = arith.constant 0 : i32
    return %c0_i32, %c0_i32_0 : i32, i32
  }
  func.func @transform_7(%arg0: i32) -> (i32, i32) {
    %c0_i32 = arith.constant 0 : i32
    %c0_i32_0 = arith.constant 0 : i32
    %c0_i32_1 = arith.constant 0 : i32
    return %c0_i32, %c0_i32_0 : i32, i32
  }
}

</mosaic_0001>

<llo_original>
// kernel: tpu_custom_call.1
$region0: #{tpu_custom_call.1}
  #allocation0 [shape = 'u32[]', space=smem, size = 0x4, offset = 0x4, fixed_abs, tag = 'smem constant byte address 0x4 - core index']
  #allocation1 [shape = 'u32[72,128]{1,0:T(1,128)}', space=vmem, size = 0x9000, scoped, tag = 'internal scratch']
  #allocation2 [shape = 'f32[1]{0:T(128)S(6)}', space=smem, size = 0x200, scoped, tag = 'scoped memory for tpu_custom_call.1']
  %s0 = inlined_call_operand.<no memory space> [shape: f32[1], index: 0, kind: input, shape index: {}]
  %s1 = inlined_call_operand.hbm [shape: bf16[8,128], index: 1, kind: input, shape index: {}]
  %s2 = inlined_call_operand.hbm [shape: bf16[128,128], index: 2, kind: input, shape index: {}]
  %s3 = inlined_call_operand.vmem [shape: f32[1,128], index: 3, kind: input, shape index: {}]
  %s4 = inlined_call_operand.vmem [shape: f32[1,128], index: 4, kind: input, shape index: {}]
  %s5 = inlined_call_operand.hbm [shape: bf16[128,128], index: 5, kind: input, shape index: {}]
  %s6 = inlined_call_operand.vmem [shape: f32[1,128], index: 6, kind: input, shape index: {}]
  %s7 = inlined_call_operand.hbm [shape: f32[8,128], index: 7, kind: output, shape index: {}]
  %s8 = sld [smem:[#allocation0]]
  $region50: #{tpu_custom_call.1} parent=0
    _
  %s10 = ssub.s32 1, %s8
  %s11 = scalar_select 0, %s10, %s8
  %12 = sst [smem:[#allocation2]] %s0
  $region1: #{tpu_custom_call.1} parent=0
    #allocation3 [shape = 'u8[2048]{0}', space=vmem, size = 0x800, scoped, tag = 'input window, operand 1, single buffered']
    #allocation4 [shape = 's32[1]{0}', space=sflag, size = 0x4, scoped, tag = 'scoped memory for tpu_custom_call.1']
    #allocation5 [shape = 's32[1]{0}', space=sflag, size = 0x4, scoped, tag = 'scoped memory for tpu_custom_call.1']
    #allocation6 [shape = 'u8[32768]{0}', space=vmem, size = 0x8000, scoped, tag = 'input window, operand 2, single buffered']
    #allocation7 [shape = 's32[1]{0}', space=sflag, size = 0x4, scoped, tag = 'scoped memory for tpu_custom_call.1']
    #allocation8 [shape = 'u8[32768]{0}', space=vmem, size = 0x8000, scoped, tag = 'input window, operand 5, single buffered']
    #allocation9 [shape = 'u8[4096]{0}', space=vmem, size = 0x1000, scoped, tag = 'output window, operand 0, single buffered']
    %13 = vsyncpa [#allocation4], 0
    %14 = vsyncpa [#allocation7], 0
    %15 = vsyncpa [#allocation5], 0
    // Predicated region
    $region2: #{tpu_custom_call.1} parent=1 // pred_check
      _
    $region3: #{tpu_custom_call.1} parent=1 // pred_check_branch
      %17 = sbr.rel (0) target = $region5
    $region4: #{tpu_custom_call.1} parent=1 // pred_region
      _
    $region5: #{tpu_custom_call.1} parent=1 // pred_fallthru
      _
    // Predicated region
    $region6: #{tpu_custom_call.1} parent=1 // pred_check
      _
    $region7: #{tpu_custom_call.1} parent=1 // pred_check_branch
      %19 = sbr.rel (0) target = $region9
    $region8: #{tpu_custom_call.1} parent=1 // pred_region
      %21 = vsyncadd [#allocation4], 0
      %s23 = sshll.u32 %s1, 4
      %s24 = int_to_ptr.hbm [resolvable:$true] %s23
      %s25 = sshll.u32 [#allocation3], 4
      %s26 = int_to_ptr.vmem [resolvable:$true] %s25
      %28 = dma.hbm_to_vmem [thread:$0]  %s24, 64, %s26, [#allocation4]
    $region9: #{tpu_custom_call.1} parent=1 // pred_fallthru
      _
    // Predicated region
    $region10: #{tpu_custom_call.1} parent=1 // pred_check
      _
    $region11: #{tpu_custom_call.1} parent=1 // pred_check_branch
      %30 = sbr.rel (0) target = $region13
    $region12: #{tpu_custom_call.1} parent=1 // pred_region
      %32 = vsyncadd [#allocation7], 0
      %s33 = sshll.u32 %s2, 4
      %s34 = int_to_ptr.hbm [resolvable:$true] %s33
      %s35 = sshll.u32 [#allocation6], 4
      %s36 = int_to_ptr.vmem [resolvable:$true] %s35
      %41 = dma.hbm_to_vmem [thread:$0]  %s34, 1024, %s36, [#allocation7], 64, 64, 4
    $region13: #{tpu_custom_call.1} parent=1 // pred_fallthru
      _
    // Predicated region
    $region14: #{tpu_custom_call.1} parent=1 // pred_check
      _
    $region15: #{tpu_custom_call.1} parent=1 // pred_check_branch
      %43 = sbr.rel (0) target = $region17
    $region16: #{tpu_custom_call.1} parent=1 // pred_region
      _
    $region17: #{tpu_custom_call.1} parent=1 // pred_fallthru
      _
    // Predicated region
    $region18: #{tpu_custom_call.1} parent=1 // pred_check
      _
    $region19: #{tpu_custom_call.1} parent=1 // pred_check_branch
      %45 = sbr.rel (0) target = $region21
    $region20: #{tpu_custom_call.1} parent=1 // pred_region
      _
    $region21: #{tpu_custom_call.1} parent=1 // pred_fallthru
      _
    // Predicated region
    $region22: #{tpu_custom_call.1} parent=1 // pred_check
      _
    $region23: #{tpu_custom_call.1} parent=1 // pred_check_branch
      %47 = sbr.rel (0) target = $region25
    $region24: #{tpu_custom_call.1} parent=1 // pred_region
      %49 = vsyncadd [#allocation7], 0
      %s50 = sshll.u32 %s5, 4
      %s51 = int_to_ptr.hbm [resolvable:$true] %s50
      %s52 = sshll.u32 [#allocation8], 4
      %s53 = int_to_ptr.vmem [resolvable:$true] %s52
      %58 = dma.hbm_to_vmem [thread:$0]  %s51, 1024, %s53, [#allocation7], 64, 64, 4
    $region25: #{tpu_custom_call.1} parent=1 // pred_fallthru
      _
    // Predicated region
    $region26: #{tpu_custom_call.1} parent=1 // pred_check
      _
    $region27: #{tpu_custom_call.1} parent=1 // pred_check_branch
      %60 = sbr.rel (0) target = $region29
    $region28: #{tpu_custom_call.1} parent=1 // pred_region
      _
    $region29: #{tpu_custom_call.1} parent=1 // pred_fallthru
      _
    // Predicated region
    $region30: #{tpu_custom_call.1} parent=1 // pred_check
      _
    $region31: #{tpu_custom_call.1} parent=1 // pred_check_branch
      %62 = sbr.rel (0) target = $region33
    $region32: #{tpu_custom_call.1} parent=1 // pred_region
      %64 = dma.done [#allocation4], 64
    $region33: #{tpu_custom_call.1} parent=1 // pred_fallthru
      _
    // Predicated region
    $region34: #{tpu_custom_call.1} parent=1 // pred_check
      _
    $region35: #{tpu_custom_call.1} parent=1 // pred_check_branch
      %66 = sbr.rel (0) target = $region37
    $region36: #{tpu_custom_call.1} parent=1 // pred_region
      %68 = dma.done [#allocation7], 1024
    $region37: #{tpu_custom_call.1} parent=1 // pred_fallthru
      _
    // Predicated region
    $region38: #{tpu_custom_call.1} parent=1 // pred_check
      _
    $region39: #{tpu_custom_call.1} parent=1 // pred_check_branch
      %70 = sbr.rel (0) target = $region41
    $region40: #{tpu_custom_call.1} parent=1 // pred_region
      %72 = dma.done [#allocation7], 1024
    $region41: #{tpu_custom_call.1} parent=1 // pred_fallthru
      _
    %v73 = vld [vmem:[#allocation3] sm:$0xf]
    %v74 = vld [vmem:[#allocation6] sm:$0xf]
    %v75 = vld [vmem:[#allocation6 + $0x4] sm:$0xf]
    %v76 = vld [vmem:[#allocation6 + $0x8] sm:$0xf]
    %v77 = vld [vmem:[#allocation6 + $0xc] sm:$0xf]
    %v78 = vld [vmem:[#allocation6 + $0x10] sm:$0xf]
    %v79 = vld [vmem:[#allocation6 + $0x14] sm:$0xf]
    %v80 = vld [vmem:[#allocation6 + $0x18] sm:$0xf]
    %v81 = vld [vmem:[#allocation6 + $0x1c] sm:$0xf]
    %v82 = vld [vmem:[#allocation6 + $0x20] sm:$0xf]
    %v83 = vld [vmem:[#allocation6 + $0x24] sm:$0xf]
    %v84 = vld [vmem:[#allocation6 + $0x28] sm:$0xf]
    %v85 = vld [vmem:[#allocation6 + $0x2c] sm:$0xf]
    %v86 = vld [vmem:[#allocation6 + $0x30] sm:$0xf]
    %v87 = vld [vmem:[#allocation6 + $0x34] sm:$0xf]
    %v88 = vld [vmem:[#allocation6 + $0x38] sm:$0xf]
    %v89 = vld [vmem:[#allocation6 + $0x3c] sm:$0xf]
    %v106 = vunpack.c.l.b16 %v74
    %v107 = vunpack.c.l.b16 %v75
    %v108 = vunpack.c.l.b16 %v76
    %v109 = vunpack.c.l.b16 %v77
    %v110 = vunpack.c.l.b16 %v78
    %v111 = vunpack.c.l.b16 %v79
    %v112 = vunpack.c.l.b16 %v80
    %v113 = vunpack.c.l.b16 %v81
    %v114 = vunpack.c.l.b16 %v82
    %v115 = vunpack.c.l.b16 %v83
    %v116 = vunpack.c.l.b16 %v84
    %v117 = vunpack.c.l.b16 %v85
    %v118 = vunpack.c.l.b16 %v86
    %v119 = vunpack.c.l.b16 %v87
    %v120 = vunpack.c.l.b16 %v88
    %v121 = vunpack.c.l.b16 %v89
    %v122 = vpack.c.b16 %v107, %v106
    %v123 = vpack.c.b16 %v109, %v108
    %v124 = vpack.c.b16 %v111, %v110
    %v125 = vpack.c.b16 %v113, %v112
    %v126 = vpack.c.b16 %v115, %v114
    %v127 = vpack.c.b16 %v117, %v116
    %v128 = vpack.c.b16 %v119, %v118
    %v129 = vpack.c.b16 %v121, %v120
    %138 = vmatpush.bf16.msra.mxu0 %v129
    %139 = vmatpush.bf16.msra.mxu0 %v128
    %140 = vmatpush.bf16.msra.mxu0 %v127
    %141 = vmatpush.bf16.msra.mxu0 %v126
    %142 = vmatpush.bf16.msra.mxu0 %v125
    %143 = vmatpush.bf16.msra.mxu0 %v124
    %144 = vmatpush.bf16.msra.mxu0 %v123
    %145 = vmatpush.bf16.msra.mxu0 %v122
    %146 = vmatmul.bf16.gmra.mxu0 %v73
    %v147 = vpop.f32.mrf.mxu0
    %v148 = vadd.f32 0.0, %v147
    %v149 = vpop.f32.mrf.mxu0
    %150 = vdwg.mxu0
    %s151 = sld [smem:[#allocation2]]
    %v152 = vadd.f32 %v148, 0.0
    %v153 = vrot.slane %v152, 4
    %v154 = vadd.f32 %v152, %v153
    %v155 = vrot.slane %v154, 2
    %v156 = vadd.f32 %v154, %v155
    %v157 = vrot.slane %v156, 1
    %v158 = vadd.f32 %v156, %v157
    %v159 = vstv %s151
    %v160 = vmul.f32 %v158, %v159
    %v161 = vsub.f32 %v148, %v160
    %v162 = vmul.f32 %v161, %v161
    %v163 = vadd.f32 %v162, 0.0
    %v164 = vrot.slane %v163, 4
    %v165 = vadd.f32 %v163, %v164
    %v166 = vrot.slane %v165, 2
    %v167 = vadd.f32 %v165, %v166
    %v168 = vrot.slane %v167, 1
    %v169 = vadd.f32 %v167, %v168
    %v170 = vmul.f32 %v160, 0.0
    %v171 = vmul.f32 %v170, %v160
    %v172 = vsub.f32 %v169, %v171
    %v173 = vmul.f32 %v172, %v159
    %v174 = vmax.f32 %v173, 0.0
    %v175 = vld [vmem:[%s3] sm:$0x1]
    %v176 = vadd.f32 %v174, 1e-05
    %v177 = vrsqrt.pop %v176
    %v178 = vmul.f32 %v177, %v176
    %v179 = vmul.f32 %v178, %v177
    %v180 = vmul.f32 0.5, %v179
    %v181 = vsub.f32 1.5, %v180
    %v182 = vmul.f32 %v177, %v181
    %vm183 = vweird.f32 %v176
    %vm184 = vweird.f32 %v177
    %vm185 = vmor %vm183, %vm184
    %v186 = vsel %vm185, %v177, %v182
    %v187 = vmul.f32 %v175, %v186
    %v189 = vperm.slane %v187, 0
    %v191 = vmul.f32 %v161, %v189
    %v192 = vld [vmem:[%s4] sm:$0x1]
    %v194 = vperm.slane %v192, 0
    %v196 = vadd.f32 %v191, %v194
    %vm197 = vcmp.ge.f32.partialorder %v196, 0.0
    %v198 = vmul.f32 %v196, 0.01
    %v199 = vsel %vm197, %v196, %v198
    %v200 = vpack.c.bf16 %v199, %v199
    %v201 = vld [vmem:[#allocation8] sm:$0xf]
    %v202 = vld [vmem:[#allocation8 + $0x4] sm:$0xf]
    %v203 = vld [vmem:[#allocation8 + $0x8] sm:$0xf]
    %v204 = vld [vmem:[#allocation8 + $0xc] sm:$0xf]
    %v205 = vld [vmem:[#allocation8 + $0x10] sm:$0xf]
    %v206 = vld [vmem:[#allocation8 + $0x14] sm:$0xf]
    %v207 = vld [vmem:[#allocation8 + $0x18] sm:$0xf]
    %v208 = vld [vmem:[#allocation8 + $0x1c] sm:$0xf]
    %v209 = vld [vmem:[#allocation8 + $0x20] sm:$0xf]
    %v210 = vld [vmem:[#allocation8 + $0x24] sm:$0xf]
    %v211 = vld [vmem:[#allocation8 + $0x28] sm:$0xf]
    %v212 = vld [vmem:[#allocation8 + $0x2c] sm:$0xf]
    %v213 = vld [vmem:[#allocation8 + $0x30] sm:$0xf]
    %v214 = vld [vmem:[#allocation8 + $0x34] sm:$0xf]
    %v215 = vld [vmem:[#allocation8 + $0x38] sm:$0xf]
    %v216 = vld [vmem:[#allocation8 + $0x3c] sm:$0xf]
    %v217 = vld [vmem:[%s6] sm:$0x1]
    %v219 = vperm.slane %v217, 0
    %v237 = vunpack.c.l.b16 %v201
    %v238 = vunpack.c.l.b16 %v202
    %v239 = vunpack.c.l.b16 %v203
    %v240 = vunpack.c.l.b16 %v204
    %v241 = vunpack.c.l.b16 %v205
    %v242 = vunpack.c.l.b16 %v206
    %v243 = vunpack.c.l.b16 %v207
    %v244 = vunpack.c.l.b16 %v208
    %v245 = vunpack.c.l.b16 %v209
    %v246 = vunpack.c.l.b16 %v210
    %v247 = vunpack.c.l.b16 %v211
    %v248 = vunpack.c.l.b16 %v212
    %v249 = vunpack.c.l.b16 %v213
    %v250 = vunpack.c.l.b16 %v214
    %v251 = vunpack.c.l.b16 %v215
    %v252 = vunpack.c.l.b16 %v216
    %v253 = vpack.c.b16 %v238, %v237
    %v254 = vpack.c.b16 %v240, %v239
    %v255 = vpack.c.b16 %v242, %v241
    %v256 = vpack.c.b16 %v244, %v243
    %v257 = vpack.c.b16 %v246, %v245
    %v258 = vpack.c.b16 %v248, %v247
    %v259 = vpack.c.b16 %v250, %v249
    %v260 = vpack.c.b16 %v252, %v251
    %269 = vmatpush.bf16.msra.mxu0 %v260
    %270 = vmatpush.bf16.msra.mxu0 %v259
    %271 = vmatpush.bf16.msra.mxu0 %v258
    %272 = vmatpush.bf16.msra.mxu0 %v257
    %273 = vmatpush.bf16.msra.mxu0 %v256
    %274 = vmatpush.bf16.msra.mxu0 %v255
    %275 = vmatpush.bf16.msra.mxu0 %v254
    %276 = vmatpush.bf16.msra.mxu0 %v253
    %277 = vmatmul.bf16.gmra.mxu0 %v200
    %v278 = vpop.f32.mrf.mxu0
    %v279 = vadd.f32 %v219, %v278
    %v280 = vpop.f32.mrf.mxu0
    %281 = vdwg.mxu0
    %282 = vst [vmem:[#allocation9] sm:$0xff] %v279
    // Predicated region
    $region42: #{tpu_custom_call.1} parent=1 // pred_check
      _
    $region43: #{tpu_custom_call.1} parent=1 // pred_check_branch
      %284 = sbr.rel (0) target = $region45
    $region44: #{tpu_custom_call.1} parent=1 // pred_region
      %286 = vsyncadd [#allocation5], 0
      %s288 = sshll.u32 [#allocation9], 4
      %s289 = int_to_ptr.vmem [resolvable:$true] %s288
      %s290 = sshll.u32 %s7, 4
      %s291 = int_to_ptr.hbm [resolvable:$true] %s290
      %293 = dma.vmem_to_hbm [thread:$0]  %s289, 128, %s291, [#allocation5]
    $region45: #{tpu_custom_call.1} parent=1 // pred_fallthru
      _
    // Predicated region
    $region46: #{tpu_custom_call.1} parent=1 // pred_check
      _
    $region47: #{tpu_custom_call.1} parent=1 // pred_check_branch
      %295 = sbr.rel (0) target = $region49
    $region48: #{tpu_custom_call.1} parent=1 // pred_region
      %297 = dma.done [#allocation5], 128
    $region49: #{tpu_custom_call.1} parent=1 // pred_fallthru
      _
    %298 = vsyncpa [#allocation4], 1
    %299 = vsyncpa [#allocation7], 1
    %300 = vsyncpa [#allocation5], 1

</llo_original>
